<compile_context>
chip_gen: v7x
topology: tpu7x:2x2x1
jax: 0.10.0
libtpu: 0.0.40
codegen_flags: <defaults>
</compile_context>

<pallas_src>
import functools

import numpy as np
import jax
import jax.numpy as jnp
from jax.experimental import pallas as pl
from jax.experimental.pallas import tpu as pltpu


# ---------------------------------------------------------------------------
# helpers
# ---------------------------------------------------------------------------

def _round_up(x, m):
    return ((x + m - 1) // m) * m


@functools.lru_cache(maxsize=1)
def _vmem_limit_bytes():
    """Per-generation VMEM cap: leave headroom on v7x (64 MiB physical VMEM)."""
    try:
        cap = getattr(pltpu.get_tpu_info(), "vmem_capacity_bytes", None)
        if cap:
            return int(min(cap - 16 * 1024 * 1024, 100 * 1024 * 1024))
    except Exception:
        pass
    return 48 * 1024 * 1024  # safe everywhere (v5e/v6e/v7x)


def _row_tile(m, target):
    """Row (sublane) tile.  Keeps the tile large even when m (= B*S, S often 257)
    has awkward factors: the grid uses pl.cdiv and the last block overhangs.
    Only used for kernels whose math is row-wise independent."""
    if m <= target:
        return m                      # full dim is always a legal block size
    nblk = -(-m // target)
    return _round_up(-(-m // nblk), 8)


def _col_tile(dim, target):
    """Lane tile: largest multiple of 128 dividing `dim` (<= target), else full dim."""
    if dim <= target:
        return dim
    t = (target // 128) * 128
    while t >= 128:
        if dim % t == 0:
            return t
        t -= 128
    return dim


# ---------------------------------------------------------------------------
# Pallas kernels
# ---------------------------------------------------------------------------

def _ln_kernel(x_ref, g_ref, b_ref, o_ref, *, eps):
    # fp32 LayerNorm over the last dim (matches the custom LayerNorm fp32 cast).
    x = x_ref[...].astype(jnp.float32)
    mu = jnp.mean(x, axis=-1, keepdims=True)
    var = jnp.mean(jnp.square(x - mu), axis=-1, keepdims=True)
    y = ((x - mu) * jax.lax.rsqrt(var + eps)) * g_ref[...] + b_ref[...]
    o_ref[...] = y.astype(o_ref.dtype)


def _ln_mm_kernel(x_ref, g_ref, b_ref, w_ref, bias_ref, o_ref, y_ref, *, eps, gelu):
    # Fused LayerNorm -> matmul -> bias [-> QuickGELU].
    # LN (fp32 stats) is computed ONCE per M tile (j == 0) into a bf16 VMEM scratch
    # and reused for every N tile of the same M tile.
    @pl.when(pl.program_id(1) == 0)
    def _ln():
        x = x_ref[...].astype(jnp.float32)
        mu = jnp.mean(x, axis=-1, keepdims=True)
        var = jnp.mean(jnp.square(x - mu), axis=-1, keepdims=True)
        y = ((x - mu) * jax.lax.rsqrt(var + eps)) * g_ref[...] + b_ref[...]
        y_ref[...] = y.astype(jnp.bfloat16)

    acc = jnp.dot(y_ref[...], w_ref[...],
                  preferred_element_type=jnp.float32) + bias_ref[...]
    if gelu:
        acc = acc * jax.nn.sigmoid(1.702 * acc)          # QuickGELU
    o_ref[...] = acc.astype(o_ref.dtype)


def _mm_kernel(x_ref, w_ref, o_ref):
    # K-tiled matmul; accumulate directly into the resident fp32 output block.
    @pl.when(pl.program_id(2) == 0)
    def _init():
        o_ref[...] = jnp.zeros_like(o_ref)

    o_ref[...] += jnp.dot(x_ref[...].astype(jnp.bfloat16), w_ref[...],
                          preferred_element_type=jnp.float32)


def _mm_bias_res_kernel(x_ref, w_ref, b_ref, r_ref, o_ref):
    # out = x @ w + b + residual; bias/residual folded in at k == 0, then accumulate.
    @pl.when(pl.program_id(2) == 0)
    def _init():
        o_ref[...] = r_ref[...].astype(jnp.float32) + b_ref[...]

    o_ref[...] += jnp.dot(x_ref[...].astype(jnp.bfloat16), w_ref[...],
                          preferred_element_type=jnp.float32)


def _softmax_attn(q, k, v):
    # q, k, v: (S, Dh) bf16.  Softmax scale already folded into the QKV projection.
    s = jax.lax.dot_general(q, k, (((1,), (1,)), ((), ())),
                            preferred_element_type=jnp.float32)     # (S, S)
    s = s - jnp.max(s, axis=-1, keepdims=True)
    e = jnp.exp(s)
    p = e * pl.reciprocal(jnp.sum(e, axis=-1, keepdims=True), approx=True)
    return jnp.dot(p.astype(jnp.bfloat16), v, preferred_element_type=jnp.float32)


def _attn_group_kernel(q_ref, k_ref, v_ref, o_ref, *, heads_per_group, head_dim):
    # One (image, 128-lane head group) per step: lane-aligned loads, at most a couple
    # of fp32 (S, Dh) partials live, and a single lane-dense (S, 128) store.
    q = q_ref[0]
    k = k_ref[0]
    v = v_ref[0]
    outs = []
    for h in range(heads_per_group):
        lo, hi = h * head_dim, (h + 1) * head_dim
        outs.append(_softmax_attn(q[:, lo:hi], k[:, lo:hi], v[:, lo:hi]))
    o_ref[0] = jnp.concatenate(outs, axis=-1).astype(o_ref.dtype)


def _attn_full_kernel(qkv_ref, o_ref, *, num_heads):
    # Fallback for small/toy widths (D < 128): all heads of one image per step.
    D = o_ref.shape[2]
    Dh = D // num_heads
    qkv = qkv_ref[0]                                      # (S, 3D) bf16
    outs = []
    for h in range(num_heads):
        lo, hi = h * Dh, (h + 1) * Dh
        outs.append(_softmax_attn(qkv[:, lo:hi],
                                  qkv[:, D + lo:D + hi],
                                  qkv[:, 2 * D + lo:2 * D + hi]))
    o_ref[0] = jnp.concatenate(outs, axis=-1).astype(o_ref.dtype)


# ---------------------------------------------------------------------------
# Pallas wrappers
# ---------------------------------------------------------------------------

def layernorm(x, gamma, beta, *, eps=1e-5, tm=256):
    M, D = x.shape
    tm = _row_tile(M, tm)
    return pl.pallas_call(
        functools.partial(_ln_kernel, eps=eps),
        out_shape=jax.ShapeDtypeStruct((M, D), jnp.float32),
        grid=(pl.cdiv(M, tm),),
        in_specs=[pl.BlockSpec((tm, D), lambda i: (i, 0)),
                  pl.BlockSpec((1, D), lambda i: (0, 0)),
                  pl.BlockSpec((1, D), lambda i: (0, 0))],
        out_specs=pl.BlockSpec((tm, D), lambda i: (i, 0)),
        compiler_params=pltpu.CompilerParams(
            dimension_semantics=("parallel",),
            vmem_limit_bytes=_vmem_limit_bytes()),
    )(x, gamma.reshape(1, D), beta.reshape(1, D))


def ln_mm_bias(x, gamma, beta, w, bias, *, gelu=False, eps=1e-5,
               out_dtype=jnp.bfloat16, tm=256, tn=512):
    """Fused LayerNorm(x) @ w + bias [with QuickGELU]; K (=D) kept whole per step."""
    M, D = x.shape
    _, N = w.shape
    tm = _row_tile(M, tm)
    tn = _col_tile(N, tn)
    cost = pl.CostEstimate(
        flops=2 * M * N * D,
        transcendentals=(M * N) if gelu else 0,
        bytes_accessed=int(x.size * x.dtype.itemsize + w.size * w.dtype.itemsize
                           + M * N * np.dtype(out_dtype).itemsize))
    return pl.pallas_call(
        functools.partial(_ln_mm_kernel, eps=eps, gelu=gelu),
        out_shape=jax.ShapeDtypeStruct((M, N), out_dtype),
        grid=(pl.cdiv(M, tm), N // tn),
        in_specs=[pl.BlockSpec((tm, D), lambda i, j: (i, 0)),
                  pl.BlockSpec((1, D), lambda i, j: (0, 0)),
                  pl.BlockSpec((1, D), lambda i, j: (0, 0)),
                  pl.BlockSpec((D, tn), lambda i, j: (0, j)),
                  pl.BlockSpec((1, tn), lambda i, j: (0, j))],
        out_specs=pl.BlockSpec((tm, tn), lambda i, j: (i, j)),
        scratch_shapes=[pltpu.VMEM((tm, D), jnp.bfloat16)],   # cached normalized block
        compiler_params=pltpu.CompilerParams(
            dimension_semantics=("parallel", "arbitrary"),
            vmem_limit_bytes=_vmem_limit_bytes()),
        cost_estimate=cost,
    )(x, gamma.reshape(1, D), beta.reshape(1, D), w, bias.reshape(1, N))


def matmul(x, w, *, tm=256, tn=512, tk=512):
    M, K = x.shape
    _, N = w.shape
    tm = _row_tile(M, tm)
    tn = _col_tile(N, tn)
    tk = _col_tile(K, tk)                                   # divides K exactly
    cost = pl.CostEstimate(
        flops=2 * M * N * K, transcendentals=0,
        bytes_accessed=int(x.size * x.dtype.itemsize + w.size * w.dtype.itemsize
                           + M * N * 4))
    return pl.pallas_call(
        _mm_kernel,
        out_shape=jax.ShapeDtypeStruct((M, N), jnp.float32),
        grid=(pl.cdiv(M, tm), N // tn, K // tk),
        in_specs=[pl.BlockSpec((tm, tk), lambda i, j, k: (i, k)),
                  pl.BlockSpec((tk, tn), lambda i, j, k: (k, j))],
        out_specs=pl.BlockSpec((tm, tn), lambda i, j, k: (i, j)),
        compiler_params=pltpu.CompilerParams(
            dimension_semantics=("parallel", "parallel", "arbitrary"),
            vmem_limit_bytes=_vmem_limit_bytes()),
        cost_estimate=cost,
    )(x, w)


def mm_bias_res(x, w, b, res, *, tm=256, tn=512, tk=512):
    M, K = x.shape
    _, N = w.shape
    tm = _row_tile(M, tm)
    tn = _col_tile(N, tn)
    tk = _col_tile(K, tk)
    cost = pl.CostEstimate(
        flops=2 * M * N * K, transcendentals=0,
        bytes_accessed=int(x.size * x.dtype.itemsize + w.size * w.dtype.itemsize
                           + res.size * res.dtype.itemsize + M * N * 4))
    return pl.pallas_call(
        _mm_bias_res_kernel,
        out_shape=jax.ShapeDtypeStruct((M, N), jnp.float32),
        grid=(pl.cdiv(M, tm), N // tn, K // tk),
        in_specs=[pl.BlockSpec((tm, tk), lambda i, j, k: (i, k)),
                  pl.BlockSpec((tk, tn), lambda i, j, k: (k, j)),
                  pl.BlockSpec((1, tn), lambda i, j, k: (0, j)),
                  pl.BlockSpec((tm, tn), lambda i, j, k: (i, j))],
        out_specs=pl.BlockSpec((tm, tn), lambda i, j, k: (i, j)),
        compiler_params=pltpu.CompilerParams(
            dimension_semantics=("parallel", "parallel", "arbitrary"),
            vmem_limit_bytes=_vmem_limit_bytes()),
        cost_estimate=cost,
    )(x, w, b.reshape(1, N), res)


def attention(qkv, num_heads):
    """qkv: (B, S, 3D) packed [q;k;v] (bf16, softmax scale already folded into q)
    -> (B, S, D) bf16."""
    B, S, D3 = qkv.shape
    D = D3 // 3
    Dh = D // num_heads
    out_shape = jax.ShapeDtypeStruct((B, S, D), jnp.bfloat16)
    vmem = _vmem_limit_bytes()

    if D % 128 == 0 and 128 % Dh == 0:
        # 128-lane head groups: lane-aligned slices/stores and a second parallel grid
        # axis so v7x's two TensorCores are busy even for B == 1 / odd B.
        hpg = 128 // Dh
        n_groups = num_heads // hpg                          # == D // 128
        kern = functools.partial(_attn_group_kernel,
                                 heads_per_group=hpg, head_dim=Dh)
        return pl.pallas_call(
            kern,
            out_shape=out_shape,
            grid=(B, n_groups),
            in_specs=[
                pl.BlockSpec((1, S, 128), lambda b, g: (b, 0, g)),                 # q
                pl.BlockSpec((1, S, 128), lambda b, g: (b, 0, n_groups + g)),      # k
                pl.BlockSpec((1, S, 128), lambda b, g: (b, 0, 2 * n_groups + g)),  # v
            ],
            out_specs=pl.BlockSpec((1, S, 128), lambda b, g: (b, 0, g)),
            compiler_params=pltpu.CompilerParams(
                dimension_semantics=("parallel", "parallel"),
                vmem_limit_bytes=vmem),
        )(qkv, qkv, qkv)

    kern = functools.partial(_attn_full_kernel, num_heads=num_heads)
    return pl.pallas_call(
        kern,
        out_shape=out_shape,
        grid=(B,),
        in_specs=[pl.BlockSpec((1, S, D3), lambda b: (b, 0, 0))],
        out_specs=pl.BlockSpec((1, S, D), lambda b: (b, 0, 0)),
        compiler_params=pltpu.CompilerParams(
            dimension_semantics=("parallel",), vmem_limit_bytes=vmem),
    )(qkv)


# ---------------------------------------------------------------------------
# Model forward
# ---------------------------------------------------------------------------

def residual_block(x, lp, num_heads):
    """ResidualAttentionBlock: x += attn(ln1(x)); x += mlp(ln2(x)). x fp32, weights bf16."""
    B, S, D = x.shape
    x2 = x.reshape(B * S, D)                                          # fp32 residual stream

    # --- attention branch: fused ln1 + QKV projection (bf16), scale folded into q ---
    qkv = ln_mm_bias(x2, lp["ln1_g"], lp["ln1_b"], lp["in_proj_wT"], lp["in_proj_b"])
    o = attention(qkv.reshape(B, S, 3 * D), num_heads)                # (B, S, D) bf16
    x2 = mm_bias_res(o.reshape(B * S, D), lp["out_proj_wT"], lp["out_proj_b"], x2)

    # --- MLP branch: fused ln2 + fc + QuickGELU (bf16), then proj + residual ---
    h = ln_mm_bias(x2, lp["ln2_g"], lp["ln2_b"], lp["fc_wT"], lp["fc_b"], gelu=True)
    x2 = mm_bias_res(h, lp["proj_wT"], lp["proj_b"], x2)

    return x2.reshape(B, S, D)


def vision_transformer_forward(x, params, *, patch_size, num_heads):
    """x: NCHW float32 (B, 3, H, W) -> (B, num_patches+1, width) float32."""
    B, C, H, W = x.shape
    width = params["conv_wT"].shape[1]
    gh, gw = H // patch_size, W // patch_size
    N = gh * gw

    # conv1 (stride == kernel_size) as patch extraction + tiled matmul (bf16 operands).
    # TODO(synk): patch-extraction strided reshape/transpose stays in XLA; a dedicated
    # gather-DMA Pallas kernel could overlap it with the patch matmul.
    patches = (x.reshape(B, C, gh, patch_size, gw, patch_size)
                .transpose(0, 2, 4, 1, 3, 5)
                .reshape(B * N, C * patch_size * patch_size)
                .astype(jnp.bfloat16))
    tok = matmul(patches, params["conv_wT"]).reshape(B, N, width)

    # class token + positional embedding (cheap glue, fp32).
    cls = jnp.broadcast_to(params["class_embedding"][None, None, :], (B, 1, width))
    xt = jnp.concatenate([cls, tok], axis=1)                          # (B, N+1, width)
    xt = xt + params["positional_embedding"][None]

    S = N + 1
    h = layernorm(xt.reshape(B * S, width),
                  params["ln_pre_g"], params["ln_pre_b"]).reshape(B, S, width)

    # The (B,S,D)<->(S,B,D) permutes in PyTorch are layout-only; the math here
    # is batch-major and equivalent.
    for lp in params["layers"]:
        h = residual_block(h, lp, num_heads)

    return h


# ---------------------------------------------------------------------------
# Deterministic parameter initialization (weights pre-transposed once, bf16)
# ---------------------------------------------------------------------------

def init_params(key, *, input_resolution, patch_size, width, layers, heads):
    num_patches = (input_resolution // patch_size) ** 2
    scale = width ** (-0.5)
    attn_scale = (width // heads) ** (-0.5)
    keys = iter(jax.random.split(key, 4 + 8 * layers))

    def nrm(shape, s=0.02):
        return (s * jax.random.normal(next(keys), shape)).astype(jnp.float32)

    conv_w = nrm((width, 3, patch_size, patch_size))                  # torch layout
    params = {
        # pre-flattened & transposed to (C*p*p, width), stored bf16 for the MXU.
        "conv_wT": conv_w.reshape(width, -1).T.astype(jnp.bfloat16),
        "class_embedding": (scale * jax.random.normal(next(keys), (width,))).astype(jnp.float32),
        "positional_embedding": (scale * jax.random.normal(
            next(keys), (num_patches + 1, width))).astype(jnp.float32),
        "ln_pre_g": jnp.ones((width,), jnp.float32),
        "ln_pre_b": jnp.zeros((width,), jnp.float32),
        "layers": [],
    }
    _ = next(keys)  # keep split count stable

    for _layer in range(layers):
        in_proj_w = nrm((3 * width, width))        # torch layout (out, in)
        in_proj_b = nrm((3 * width,))
        # Fold the 1/sqrt(head_dim) softmax scale into the q columns of the QKV proj.
        in_proj_wT = in_proj_w.T                   # (D, 3D)
        in_proj_wT = in_proj_wT.at[:, :width].multiply(attn_scale)
        in_proj_b = in_proj_b.at[:width].multiply(attn_scale)

        out_proj_w = nrm((width, width))
        fc_w = nrm((4 * width, width))
        proj_w = nrm((width, 4 * width))
        lp = {
            "ln1_g": jnp.ones((width,), jnp.float32),
            "ln1_b": jnp.zeros((width,), jnp.float32),
            "in_proj_wT": in_proj_wT.astype(jnp.bfloat16),     # (D, 3D), scale folded
            "in_proj_b": in_proj_b,
            "out_proj_wT": out_proj_w.T.astype(jnp.bfloat16),  # (D, D)
            "out_proj_b": nrm((width,)),
            "ln2_g": jnp.ones((width,), jnp.float32),
            "ln2_b": jnp.zeros((width,), jnp.float32),
            "fc_wT": fc_w.T.astype(jnp.bfloat16),              # (D, 4D)
            "fc_b": nrm((4 * width,)),
            "proj_wT": proj_w.T.astype(jnp.bfloat16),          # (4D, D)
            "proj_b": nrm((width,)),
        }
        params["layers"].append(lp)
    return params


# ---------------------------------------------------------------------------

def _run_config(seed, *, input_resolution, patch_size, width, layers, heads, batch):
    key = jax.random.PRNGKey(seed)
    k_params, k_x = jax.random.split(key)
    params = init_params(k_params, input_resolution=input_resolution,
                         patch_size=patch_size, width=width,
                         layers=layers, heads=heads)
    x = jax.random.normal(k_x, (batch, 3, input_resolution, input_resolution),
                          dtype=jnp.float32)  # NCHW, like the PyTorch module
    out = vision_transformer_forward(x, params, patch_size=patch_size, num_heads=heads)
    out = jax.block_until_ready(out)
    expected = (batch, (input_resolution // patch_size) ** 2 + 1, width)
    assert out.shape == expected, (out.shape, expected)
    assert bool(jnp.all(jnp.isfinite(out)))
    return out


if __name__ == "__main__":
    # Config 1 (toy): 16x16 image, 8x8 patches -> 4 patches + cls = 5 tokens,
    # width 32, 4 heads — exercises the small-width attention fallback path.
    _run_config(0, input_resolution=16, patch_size=8, width=32,
                layers=2, heads=4, batch=2)

    # Config 2 (small but realistic layout): 32x32 image, 4x4 patches -> 64 + cls = 65
    # tokens, width 256, 2 heads, batch 4 (M = 260 > 256) — exercises the cdiv/overhang
    # row tiling and the 128-lane head-group attention path.
    _run_config(1, input_resolution=32, patch_size=4, width=256,
                layers=1, heads=2, batch=4)

    # TODO(synk): gradient checkpointing (use_gradient_checkpointing) is a training-time
    # memory optimization with no effect on forward semantics; not represented here.
    print("KERNEL_OK")
</pallas_src>

<mosaic_0001>
module attributes {stable_mosaic.version = 11 : i64} {
  func.func @_mm_kernel(%arg0: i32, %arg1: i32, %arg2: i32, %arg3: memref<8x192xbf16, #tpu.memory_space<vmem>>, %arg4: memref<192x32xbf16, #tpu.memory_space<vmem>>, %arg5: memref<8x32xf32, #tpu.memory_space<vmem>>) attributes {dimension_semantics = [#tpu.dimension_semantics<parallel>, #tpu.dimension_semantics<parallel>, #tpu.dimension_semantics<arbitrary>], iteration_bounds = array<i64: 1, 1, 1>, scalar_prefetch = 0 : i64, scratch_operands = 0 : i64, tpu.core_type = #tpu.core_type<tc>, window_params = [{transform_indices = @transform_0, window_bounds = array<i64: 8, 192>}, {transform_indices = @transform_1, window_bounds = array<i64: 192, 32>}, {transform_indices = @transform_2, window_bounds = array<i64: 8, 32>}]} {
    %c0_i32 = arith.constant 0 : i32
    %0 = arith.cmpi eq, %arg2, %c0_i32 : i32
    %1 = arith.extui %0 : i1 to i32
    %c0_i32_0 = arith.constant 0 : i32
    %2 = arith.cmpi ne, %1, %c0_i32_0 : i32
    scf.if %2 {
      %cst_8 = arith.constant 0.000000e+00 : f32
      %9 = vector.broadcast %cst_8 : f32 to vector<8x32xf32>
      %c0_9 = arith.constant 0 : index
      %c0_10 = arith.constant 0 : index
      %10 = vector.load %arg5[%c0_9, %c0_10] : memref<8x32xf32, #tpu.memory_space<vmem>>, vector<8x32xf32>
      tpu.vector_store %arg5[%c0_9, %c0_10], %9 {strides = array<i32>} : memref<8x32xf32, #tpu.memory_space<vmem>>, vector<8x32xf32>,
    } else {
    }
    %c0 = arith.constant 0 : index
    %c0_1 = arith.constant 0 : index
    %3 = vector.load %arg5[%c0, %c0_1] : memref<8x32xf32, #tpu.memory_space<vmem>>, vector<8x32xf32>
    %c0_2 = arith.constant 0 : index
    %c0_3 = arith.constant 0 : index
    %4 = vector.load %arg3[%c0_2, %c0_3] : memref<8x192xbf16, #tpu.memory_space<vmem>>, vector<8x192xbf16>
    %c0_4 = arith.constant 0 : index
    %c0_5 = arith.constant 0 : index
    %5 = vector.load %arg4[%c0_4, %c0_5] : memref<192x32xbf16, #tpu.memory_space<vmem>>, vector<192x32xbf16>
    %cst = arith.constant dense<0.000000e+00> : vector<8x32xf32>
    %6 = tpu.matmul %4, %5, %cst {dimension_numbers = #tpu.dot_dimension_numbers<[1], [0], [0], [1], [0, 0, 1, 1], [], []>} : vector<8x192xbf16>, vector<192x32xbf16>, vector<8x32xf32> -> vector<8x32xf32>
    %7 = arith.addf %3, %6 : vector<8x32xf32>
    %c0_6 = arith.constant 0 : index
    %c0_7 = arith.constant 0 : index
    %8 = vector.load %arg5[%c0_6, %c0_7] : memref<8x32xf32, #tpu.memory_space<vmem>>, vector<8x32xf32>
    tpu.vector_store %arg5[%c0_6, %c0_7], %7 {strides = array<i32>} : memref<8x32xf32, #tpu.memory_space<vmem>>, vector<8x32xf32>,
    return
  }
  func.func @transform_0(%arg0: i32, %arg1: i32, %arg2: i32) -> (i32, i32) {
    %c0_i32 = arith.constant 0 : i32
    return %arg0, %arg2 : i32, i32
  }
  func.func @transform_1(%arg0: i32, %arg1: i32, %arg2: i32) -> (i32, i32) {
    %c0_i32 = arith.constant 0 : i32
    return %arg2, %arg1 : i32, i32
  }
  func.func @transform_2(%arg0: i32, %arg1: i32, %arg2: i32) -> (i32, i32) {
    %c0_i32 = arith.constant 0 : i32
    return %arg0, %arg1 : i32, i32
  }
}

</mosaic_0001>

<llo_original>
// kernel: tpu_custom_call.1
$region0: #{tpu_custom_call.1}
  #allocation0 [shape = 'u32[]', space=smem, size = 0x4, offset = 0x4, fixed_abs, tag = 'smem constant byte address 0x4 - core index']
  #allocation1 [shape = 'u32[144,128]{1,0:T(1,128)}', space=vmem, size = 0x12000, scoped, tag = 'internal scratch']
  %s0 = inlined_call_operand.vmem [shape: bf16[8,192], index: 0, kind: input, shape index: {}]
  %s1 = inlined_call_operand.vmem [shape: bf16[192,32], index: 1, kind: input, shape index: {}]
  %s2 = inlined_call_operand.hbm [shape: f32[8,32], index: 2, kind: output, shape index: {}]
  %s3 = sld [smem:[#allocation0]]
  $region22: #{tpu_custom_call.1} parent=0
    _
  %s5 = ssub.s32 1, %s3
  %s6 = scalar_select 0, %s5, %s3
  $region1: #{tpu_custom_call.1} parent=0
    #allocation2 [shape = 'u8[4096]{0}', space=vmem, size = 0x1000, scoped, tag = 'output window, operand 0, single buffered']
    #allocation3 [shape = 's32[1]{0}', space=sflag, size = 0x4, scoped, tag = 'scoped memory for tpu_custom_call.1']
    %7 = vsyncpa [#allocation3], 0
    // Predicated region
    $region2: #{tpu_custom_call.1} parent=1 // pred_check
      _
    $region3: #{tpu_custom_call.1} parent=1 // pred_check_branch
      %9 = sbr.rel (0) target = $region5
    $region4: #{tpu_custom_call.1} parent=1 // pred_region
      _
    $region5: #{tpu_custom_call.1} parent=1 // pred_fallthru
      _
    // Predicated region
    $region6: #{tpu_custom_call.1} parent=1 // pred_check
      _
    $region7: #{tpu_custom_call.1} parent=1 // pred_check_branch
      %11 = sbr.rel (0) target = $region9
    $region8: #{tpu_custom_call.1} parent=1 // pred_region
      _
    $region9: #{tpu_custom_call.1} parent=1 // pred_fallthru
      _
    %p13 = scmp.eq.s32.totalorder 0, 0
    // Predicated region
    $region10: #{tpu_custom_call.1} parent=1 // pred_check
      %p14 = pneg %p13
    $region11: #{tpu_custom_call.1} parent=1 // pred_check_branch
      %16 = sbr.rel (%p14) target = $region13
    $region12: #{tpu_custom_call.1} parent=1 // pred_region
      %vm17 = vcmask 261120
      %18 = vst.msk [vmem:[#allocation2] sm:$0xff] %vm17, 0.0
    $region13: #{tpu_custom_call.1} parent=1 // pred_fallthru
      _
    %v19 = vld [vmem:[#allocation2] sm:$0xff]
    %v20 = vld [vmem:[%s0] sm:$0xff]
    %v21 = vld [vmem:[%s1] sm:$0xf]
    %v22 = vld [vmem:[%s1 + $0x4] sm:$0xf]
    %v23 = vld [vmem:[%s1 + $0x8] sm:$0xf]
    %v24 = vld [vmem:[%s1 + $0xc] sm:$0xf]
    %v25 = vld [vmem:[%s1 + $0x10] sm:$0xf]
    %v26 = vld [vmem:[%s1 + $0x14] sm:$0xf]
    %v27 = vld [vmem:[%s1 + $0x18] sm:$0xf]
    %v28 = vld [vmem:[%s1 + $0x1c] sm:$0xf]
    %v29 = vld [vmem:[%s1 + $0x20] sm:$0xf]
    %v30 = vld [vmem:[%s1 + $0x24] sm:$0xf]
    %v31 = vld [vmem:[%s1 + $0x28] sm:$0xf]
    %v32 = vld [vmem:[%s1 + $0x2c] sm:$0xf]
    %v33 = vld [vmem:[%s1 + $0x30] sm:$0xf]
    %v34 = vld [vmem:[%s1 + $0x34] sm:$0xf]
    %v35 = vld [vmem:[%s1 + $0x38] sm:$0xf]
    %v36 = vld [vmem:[%s1 + $0x3c] sm:$0xf]
    %v37 = vld [vmem:[%s1 + $0x40] sm:$0xf]
    %v38 = vld [vmem:[%s1 + $0x44] sm:$0xf]
    %v39 = vld [vmem:[%s1 + $0x48] sm:$0xf]
    %v40 = vld [vmem:[%s1 + $0x4c] sm:$0xf]
    %v41 = vld [vmem:[%s1 + $0x50] sm:$0xf]
    %v42 = vld [vmem:[%s1 + $0x54] sm:$0xf]
    %v43 = vld [vmem:[%s1 + $0x58] sm:$0xf]
    %v44 = vld [vmem:[%s1 + $0x5c] sm:$0xf]
    %v46 = vunpack.c.l.b16 %v20
    %v47 = vunpack.c.h.b16 %v20
    %v48 = vpack.c.b16 %v46, %v46
    %v49 = vpack.c.b16 %v47, %v47
    %v75 = vunpack.c.l.b16 %v21
    %v76 = vunpack.c.l.b16 %v22
    %v77 = vunpack.c.l.b16 %v23
    %v78 = vunpack.c.l.b16 %v24
    %v79 = vunpack.c.l.b16 %v25
    %v80 = vunpack.c.l.b16 %v26
    %v81 = vunpack.c.l.b16 %v27
    %v82 = vunpack.c.l.b16 %v28
    %v83 = vunpack.c.l.b16 %v29
    %v84 = vunpack.c.l.b16 %v30
    %v85 = vunpack.c.l.b16 %v31
    %v86 = vunpack.c.l.b16 %v32
    %v87 = vunpack.c.l.b16 %v33
    %v88 = vunpack.c.l.b16 %v34
    %v89 = vunpack.c.l.b16 %v35
    %v90 = vunpack.c.l.b16 %v36
    %v91 = vunpack.c.l.b16 %v37
    %v92 = vunpack.c.l.b16 %v38
    %v93 = vunpack.c.l.b16 %v39
    %v94 = vunpack.c.l.b16 %v40
    %v95 = vunpack.c.l.b16 %v41
    %v96 = vunpack.c.l.b16 %v42
    %v97 = vunpack.c.l.b16 %v43
    %v98 = vunpack.c.l.b16 %v44
    %v99 = vpack.c.b16 %v76, %v75
    %v100 = vpack.c.b16 %v78, %v77
    %v101 = vpack.c.b16 %v80, %v79
    %v102 = vpack.c.b16 %v82, %v81
    %v103 = vpack.c.b16 %v84, %v83
    %v104 = vpack.c.b16 %v86, %v85
    %v105 = vpack.c.b16 %v88, %v87
    %v106 = vpack.c.b16 %v90, %v89
    %v107 = vpack.c.b16 %v92, %v91
    %v108 = vpack.c.b16 %v94, %v93
    %v109 = vpack.c.b16 %v96, %v95
    %v110 = vpack.c.b16 %v98, %v97
    %vm123 = vcmask 523264
    %v125 = vsel %vm123, %v49, 0
    %127 = vmatprep.subr.bf16.mxu0 0
    %128 = vmatpush1.bf16.msra.mxu0 %v99
    %129 = vmatprep.subr.bf16.mxu0 0
    %130 = vmatpush1.bf16.msra.mxu0 %v100
    %131 = vmatprep.subr.bf16.mxu0 0
    %132 = vmatpush1.bf16.msra.mxu0 %v101
    %133 = vmatprep.subr.bf16.mxu0 0
    %134 = vmatpush1.bf16.msra.mxu0 %v102
    %135 = vmatprep.subr.bf16.mxu0 0
    %136 = vmatpush1.bf16.msra.mxu0 %v103
    %137 = vmatprep.subr.bf16.mxu0 0
    %138 = vmatpush1.bf16.msra.mxu0 %v104
    %139 = vmatprep.subr.bf16.mxu0 0
    %140 = vmatpush1.bf16.msra.mxu0 %v105
    %141 = vmatprep.subr.bf16.mxu0 0
    %142 = vmatpush1.bf16.msra.mxu0 %v106
    %143 = vmatprep.subr.bf16.mxu0 0
    %144 = vmatpush1.bf16.msra.mxu0 %v107
    %145 = vmatprep.subr.bf16.mxu0 0
    %146 = vmatpush1.bf16.msra.mxu0 %v108
    %147 = vmatprep.subr.bf16.mxu0 0
    %148 = vmatpush1.bf16.msra.mxu0 %v109
    %149 = vmatprep.subr.bf16.mxu0 0
    %150 = vmatpush1.bf16.msra.mxu0 %v110
    %151 = vmatprep.subr.bf16.mxu0 0
    %152 = vmatpush1.bf16.msra.mxu0 0
    %153 = vmatprep.subr.bf16.mxu0 0
    %154 = vmatpush1.bf16.msra.mxu0 0
    %155 = vmatprep.subr.bf16.mxu0 0
    %156 = vmatpush1.bf16.msra.mxu0 0
    %157 = vmatprep.subr.bf16.mxu0 0
    %158 = vmatpush1.bf16.msra.mxu0 0
    %159 = vmatprep.mubr.bf16.mxu0 %v125
    %160 = vmatmul.mubr.bf16.gmra.mrb[0].mxu0 %v48
    %v161 = vpop.f32.mrb[0].mxu0
    %v162 = vadd.f32 0.0, %v161
    %v163 = vpop.f32.mrb[0].mxu0
    %v164 = vpop.f32.mrb[0].mxu0
    %v165 = vpop.f32.mrb[0].mxu0
    %166 = vdwg.mxu0
    %v167 = vadd.f32 %v19, %v162
    %vm168 = vcmask 261120
    %169 = vst.msk [vmem:[#allocation2] sm:$0xff] %vm168, %v167
    // Predicated region
    $region14: #{tpu_custom_call.1} parent=1 // pred_check
      _
    $region15: #{tpu_custom_call.1} parent=1 // pred_check_branch
      %171 = sbr.rel (0) target = $region17
    $region16: #{tpu_custom_call.1} parent=1 // pred_region
      %s173 = ssub.s32 128, 128
      %174 = vsyncadd [#allocation3], %s173
      %s176 = sshll.u32 [#allocation2], 4
      %s177 = int_to_ptr.vmem [resolvable:$true] %s176
      %179 = dma.vmem_to_hbm [thread:$0]  %s177, 128, %s2, [#allocation3]
    $region17: #{tpu_custom_call.1} parent=1 // pred_fallthru
      _
    // Predicated region
    $region18: #{tpu_custom_call.1} parent=1 // pred_check
      _
    $region19: #{tpu_custom_call.1} parent=1 // pred_check_branch
      %181 = sbr.rel (0) target = $region21
    $region20: #{tpu_custom_call.1} parent=1 // pred_region
      %182 = dma.done [#allocation3], 128
    $region21: #{tpu_custom_call.1} parent=1 // pred_fallthru
      _
    %183 = vsyncpa [#allocation3], 1

</llo_original>
